<compile_context>
chip_gen: v5e
topology: v5e:2x2
jax: 0.10.0
libtpu: 0.0.40
codegen_flags: <defaults>
</compile_context>

<pallas_src>
import functools

import jax
import jax.numpy as jnp
from jax.experimental import pallas as pl
from jax.experimental.pallas import tpu as pltpu


def _se_kernel(x_ref, w1_ref, w2_ref, o_ref, *, inv_hw):
    # x_ref / o_ref: (C, HW_padded) -- one batch element; C on sublanes, spatial on lanes.
    # w1_ref: (C//r, C)   first  Linear weight, torch (out, in) layout
    # w2_ref: (C, C//r)   second Linear weight, torch (out, in) layout

    # ---- squeeze: global average pool over the spatial (lane) axis -> (C, 1) sublane-major.
    #      (Computed directly from the ref so this pass streams; padded lanes are zero and
    #       inv_hw uses the true H*W, so the mean is exact.)
    y = jnp.sum(x_ref[...].astype(jnp.float32), axis=-1, keepdims=True) * inv_hw

    # ---- excitation: Linear -> ReLU -> Linear -> Sigmoid (bias-free), all in f32.
    #      Weights stay in torch (out, in) layout so the gate comes out (C, 1)
    #      sublane-major -> no lane<->sublane relayout before the broadcast.
    h = jnp.dot(w1_ref[...].astype(jnp.float32), y,
                preferred_element_type=jnp.float32)            # (C//r, 1)
    h = jnp.maximum(h, 0.0)
    z = jnp.dot(w2_ref[...].astype(jnp.float32), h,
                preferred_element_type=jnp.float32)            # (C, 1)
    s = pl.reciprocal(1.0 + jnp.exp(-z))                       # sigmoid, f32 (EUP exp)

    # ---- scale: re-read x_ref so the multiply/store epilogue streams instead of
    #      keeping the whole activation block live across the FC stack.
    o_ref[...] = x_ref[...] * s.astype(o_ref.dtype)


def se_block(x, w1, w2):
    """SEBlock forward.

    x : (B, C, H, W)   NCHW activations (f32 or bf16)
    w1: (C//r, C)      first  Linear weight, torch (out, in) layout
    w2: (C, C//r)      second Linear weight, torch (out, in) layout
    returns (B, C, H, W)
    """
    b, c, h, w = x.shape
    hw = h * w
    # Keep the spatial axis lane-dense: pad H*W to a multiple of 128 so stores stay
    # unmasked. Padded zeros do not change the pooled sum (we divide by the true H*W).
    hw_p = ((hw + 127) // 128) * 128
    x3 = x.reshape(b, c, hw)
    if hw_p != hw:
        x3 = jnp.pad(x3, ((0, 0), (0, 0), (0, hw_p - hw)))

    kernel = functools.partial(_se_kernel, inv_hw=1.0 / hw)
    out = pl.pallas_call(
        kernel,
        out_shape=jax.ShapeDtypeStruct((b, c, hw_p), x.dtype),
        grid=(b,),  # one independent batch element per step
        in_specs=[
            pl.BlockSpec((None, c, hw_p), lambda i: (i, 0, 0)),          # x (batch squeezed)
            pl.BlockSpec((w1.shape[0], w1.shape[1]), lambda i: (0, 0)),  # w1 (tiny, resident)
            pl.BlockSpec((w2.shape[0], w2.shape[1]), lambda i: (0, 0)),  # w2 (tiny, resident)
        ],
        out_specs=pl.BlockSpec((None, c, hw_p), lambda i: (i, 0, 0)),
        compiler_params=pltpu.CompilerParams(
            # batch elements are independent -> shard across TensorCores on v7x
            dimension_semantics=("parallel",),
        ),
    )(x3, w1, w2)

    if hw_p != hw:
        out = out[:, :, :hw]
    return out.reshape(b, c, h, w)


if __name__ == "__main__":
    key = jax.random.PRNGKey(0)
    kx, k1, k2 = jax.random.split(key, 3)

    # Small shapes consistent with SEBlock(channel=128, reduction=16)
    B, C, H, W = 2, 128, 16, 16
    REDUCTION = 16
    HID = C // REDUCTION

    x = jax.random.normal(kx, (B, C, H, W), jnp.float32)
    # Torch nn.Linear weight layout is (out_features, in_features).
    w1 = (0.05 * jax.random.normal(k1, (HID, C))).astype(jnp.float32)
    w2 = (0.05 * jax.random.normal(k2, (C, HID))).astype(jnp.float32)

    out = jax.jit(se_block)(x, w1, w2)
    jax.block_until_ready(out)

    # Pure-JAX reference (matches torch SEBlock.forward semantics)
    y_ref = x.mean(axis=(2, 3))
    s_ref = jax.nn.sigmoid(jnp.maximum(y_ref @ w1.T, 0.0) @ w2.T)
    ref = x * s_ref[:, :, None, None]

    assert out.shape == (B, C, H, W)
    assert bool(jnp.all(jnp.isfinite(out)))
    assert bool(jnp.allclose(out, ref, atol=1e-4, rtol=1e-4))
    print("KERNEL_OK")
</pallas_src>

<mosaic_0001>
module attributes {stable_mosaic.version = 11 : i64} {
  func.func @_se_kernel(%arg0: i32, %arg1: memref<1x128x256xf32, #tpu.memory_space<vmem>>, %arg2: memref<8x128xf32, #tpu.memory_space<vmem>>, %arg3: memref<128x8xf32, #tpu.memory_space<vmem>>, %arg4: memref<1x128x256xf32, #tpu.memory_space<vmem>>) attributes {dimension_semantics = [#tpu.dimension_semantics<parallel>], iteration_bounds = array<i64: 2>, scalar_prefetch = 0 : i64, scratch_operands = 0 : i64, tpu.core_type = #tpu.core_type<tc>, window_params = [{transform_indices = @transform_0, window_bounds = array<i64: 1, 128, 256>}, {pipeline_mode = #tpu.pipeline_mode<synchronous>, transform_indices = @transform_1, window_bounds = array<i64: 8, 128>}, {pipeline_mode = #tpu.pipeline_mode<synchronous>, transform_indices = @transform_2, window_bounds = array<i64: 128, 8>}, {transform_indices = @transform_3, window_bounds = array<i64: 1, 128, 256>}]} {
    %c0 = arith.constant 0 : index
    %c0_0 = arith.constant 0 : index
    %c0_1 = arith.constant 0 : index
    %0 = vector.load %arg1[%c0, %c0_0, %c0_1] : memref<1x128x256xf32, #tpu.memory_space<vmem>>, vector<1x128x256xf32>
    %1 = vector.shape_cast %0 : vector<1x128x256xf32> to vector<128x256xf32>
    %cst = arith.constant dense<0.000000e+00> : vector<128xf32>
    %2 = vector.multi_reduction <add>, %1, %cst [1] : vector<128x256xf32> to vector<128xf32>
    %3 = vector.shape_cast %2 : vector<128xf32> to vector<128x1xf32>
    %cst_2 = arith.constant 3.906250e-03 : f32
    %4 = vector.broadcast %cst_2 : f32 to vector<128x1xf32>
    %5 = arith.mulf %3, %4 : vector<128x1xf32>
    %c0_3 = arith.constant 0 : index
    %c0_4 = arith.constant 0 : index
    %6 = vector.load %arg2[%c0_3, %c0_4] : memref<8x128xf32, #tpu.memory_space<vmem>>, vector<8x128xf32>
    %cst_5 = arith.constant dense<0.000000e+00> : vector<8x1xf32>
    %7 = tpu.matmul %6, %5, %cst_5 {dimension_numbers = #tpu.dot_dimension_numbers<[1], [0], [0], [1], [0, 0, 1, 1], [], []>} : vector<8x128xf32>, vector<128x1xf32>, vector<8x1xf32> -> vector<8x1xf32>
    %cst_6 = arith.constant 0.000000e+00 : f32
    %8 = vector.broadcast %cst_6 : f32 to vector<8x1xf32>
    %9 = arith.maximumf %7, %8 : vector<8x1xf32>
    %c0_7 = arith.constant 0 : index
    %c0_8 = arith.constant 0 : index
    %10 = vector.load %arg3[%c0_7, %c0_8] : memref<128x8xf32, #tpu.memory_space<vmem>>, vector<128x8xf32>
    %cst_9 = arith.constant dense<0.000000e+00> : vector<128x1xf32>
    %11 = tpu.matmul %10, %9, %cst_9 {dimension_numbers = #tpu.dot_dimension_numbers<[1], [0], [0], [1], [0, 0, 1, 1], [], []>} : vector<128x8xf32>, vector<8x1xf32>, vector<128x1xf32> -> vector<128x1xf32>
    %cst_10 = arith.constant 0.000000e+00 : f32
    %12 = vector.broadcast %cst_10 : f32 to vector<128x1xf32>
    %13 = arith.subf %12, %11 : vector<128x1xf32>
    %14 = math.exp %13 : vector<128x1xf32>
    %cst_11 = arith.constant 1.000000e+00 : f32
    %15 = vector.broadcast %cst_11 : f32 to vector<128x1xf32>
    %16 = arith.addf %15, %14 : vector<128x1xf32>
    %17 = tpu.reciprocal %16 : vector<128x1xf32> -> vector<128x1xf32>
    %c0_12 = arith.constant 0 : index
    %c0_13 = arith.constant 0 : index
    %c0_14 = arith.constant 0 : index
    %18 = vector.load %arg1[%c0_12, %c0_13, %c0_14] : memref<1x128x256xf32, #tpu.memory_space<vmem>>, vector<1x128x256xf32>
    %19 = vector.shape_cast %18 : vector<1x128x256xf32> to vector<128x256xf32>
    %20 = vector.broadcast %17 : vector<128x1xf32> to vector<128x256xf32>
    %21 = arith.mulf %19, %20 : vector<128x256xf32>
    %c0_15 = arith.constant 0 : index
    %c0_16 = arith.constant 0 : index
    %c0_17 = arith.constant 0 : index
    %22 = vector.load %arg4[%c0_15, %c0_16, %c0_17] : memref<1x128x256xf32, #tpu.memory_space<vmem>>, vector<1x128x256xf32>
    %23 = vector.shape_cast %22 : vector<1x128x256xf32> to vector<128x256xf32>
    %24 = vector.shape_cast %21 : vector<128x256xf32> to vector<1x128x256xf32>
    tpu.vector_store %arg4[%c0_15, %c0_16, %c0_17], %24 {strides = array<i32>} : memref<1x128x256xf32, #tpu.memory_space<vmem>>, vector<1x128x256xf32>,
    return
  }
  func.func @transform_0(%arg0: i32) -> (i32, i32, i32) {
    %c0_i32 = arith.constant 0 : i32
    %c0_i32_0 = arith.constant 0 : i32
    %c0_i32_1 = arith.constant 0 : i32
    return %arg0, %c0_i32, %c0_i32_0 : i32, i32, i32
  }
  func.func @transform_1(%arg0: i32) -> (i32, i32) {
    %c0_i32 = arith.constant 0 : i32
    %c0_i32_0 = arith.constant 0 : i32
    %c0_i32_1 = arith.constant 0 : i32
    return %c0_i32, %c0_i32_0 : i32, i32
  }
  func.func @transform_2(%arg0: i32) -> (i32, i32) {
    %c0_i32 = arith.constant 0 : i32
    %c0_i32_0 = arith.constant 0 : i32
    %c0_i32_1 = arith.constant 0 : i32
    return %c0_i32, %c0_i32_0 : i32, i32
  }
  func.func @transform_3(%arg0: i32) -> (i32, i32, i32) {
    %c0_i32 = arith.constant 0 : i32
    %c0_i32_0 = arith.constant 0 : i32
    %c0_i32_1 = arith.constant 0 : i32
    return %arg0, %c0_i32, %c0_i32_0 : i32, i32, i32
  }
}

</mosaic_0001>

<llo_original>
// kernel: se_block.1
$region0: #{se_block.1}
  #allocation0 [shape = 'u32[]', space=smem, size = 0x4, offset = 0x4, fixed_abs, tag = 'smem constant byte address 0x4 - core index']
  #allocation1 [shape = 'u32[72,128]{1,0:T(1,128)}', space=vmem, size = 0x9000, scoped, tag = 'internal scratch']
  %s0 = inlined_call_operand.vmem [shape: f32[2,128,256], index: 0, kind: input, shape index: {}]
  %s1 = inlined_call_operand.vmem [shape: f32[8,128], index: 1, kind: input, shape index: {}]
  %s2 = inlined_call_operand.vmem [shape: f32[128,8], index: 2, kind: input, shape index: {}]
  %s3 = inlined_call_operand.vmem [shape: f32[2,128,256], index: 3, kind: output, shape index: {}]
  %s4 = sld [smem:[#allocation0]]
  $region45: #{se_block.1} parent=0
    _
  %s6 = ssub.s32 1, %s4
  %s7 = scalar_select 0, %s6, %s4
  loop: start=0, step=1, limit=4
  $region2: #{se_block.1} parent=0 // loop_pre_header
    _
  $region3: #{se_block.1} parent=0 // loop_header
    %s9 = sphi 0, %s13
    %p10 = scmp.ge.s32.totalorder %s9, 4
    %s19 = sphi 0, %s21
    %s22 = sphi 0, %s19
    %s23 = sphi 0, %s22
    %s39 = sphi 0, %s23
    %s43 = sphi 0, %s43
    %s45 = sphi 0, %s43
    %s46 = sphi 0, %s45
    %s60 = sphi 0, %s46
    %s64 = sphi 0, %s64
    %s66 = sphi 0, %s64
    %s67 = sphi 0, %s66
    %s81 = sphi 0, %s67
    %s87 = sphi 0, %s89
    %s90 = sphi 0, %s87
    %s91 = sphi 0, %s90
    %s107 = sphi 0, %s91
  $region4: #{se_block.1} parent=0 // loop_header_branch
    %12 = sbr.rel (%p10) target = $region8
  $region5: #{se_block.1} parent=0 // loop_body
    %s14 = ssub.s32 %s9, 1
    %s15 = ssub.s32 %s9, 2
    %s16 = sadd.s32 %s9, 1
    %s17 = ssub.s32 %s9, %s16
    %p18 = scmp.eq.s32.totalorder %s17, 0
    %s20 = sadd.s32 %s19, 1
    %s21 = scalar_select %p18, %s19, %s20
    %p24 = pneg %p18
    %p25 = scmp.eq.s32.totalorder %s9, 1
    %p26 = por %p24, %p25
    %p27 = scmp.ne.s32.totalorder %s19, %s22
    %p28 = scmp.eq.s32.totalorder %s9, 0
    %p29 = por %p27, %p28
    %p30 = scmp.ne.s32.totalorder %s19, %s22
    %p31 = scmp.eq.s32.totalorder %s14, 1
    %p32 = por %p30, %p31
    %p33 = scmp.ne.s32.totalorder %s22, %s23
    %p34 = scmp.eq.s32.totalorder %s14, 0
    %p35 = por %p33, %p34
    %p36 = scmp.ne.s32.totalorder %s22, %s23
    %p37 = scmp.eq.s32.totalorder %s15, 1
    %p38 = por %p36, %p37
    %p40 = scmp.ne.s32.totalorder %s23, %s39
    %p41 = scmp.eq.s32.totalorder %s15, 0
    %p42 = por %p40, %p41
    %s44 = sadd.s32 %s43, 1
    %p47 = scmp.eq.s32.totalorder %s9, 1
    %p48 = scmp.ne.s32.totalorder %s43, %s45
    %p49 = scmp.eq.s32.totalorder %s9, 0
    %p50 = por %p48, %p49
    %p51 = scmp.ne.s32.totalorder %s43, %s45
    %p52 = scmp.eq.s32.totalorder %s14, 1
    %p53 = por %p51, %p52
    %p54 = scmp.ne.s32.totalorder %s45, %s46
    %p55 = scmp.eq.s32.totalorder %s14, 0
    %p56 = por %p54, %p55
    %p57 = scmp.ne.s32.totalorder %s45, %s46
    %p58 = scmp.eq.s32.totalorder %s15, 1
    %p59 = por %p57, %p58
    %p61 = scmp.ne.s32.totalorder %s46, %s60
    %p62 = scmp.eq.s32.totalorder %s15, 0
    %p63 = por %p61, %p62
    %s65 = sadd.s32 %s64, 1
    %p68 = scmp.eq.s32.totalorder %s9, 1
    %p69 = scmp.ne.s32.totalorder %s64, %s66
    %p70 = scmp.eq.s32.totalorder %s9, 0
    %p71 = por %p69, %p70
    %p72 = scmp.ne.s32.totalorder %s64, %s66
    %p73 = scmp.eq.s32.totalorder %s14, 1
    %p74 = por %p72, %p73
    %p75 = scmp.ne.s32.totalorder %s66, %s67
    %p76 = scmp.eq.s32.totalorder %s14, 0
    %p77 = por %p75, %p76
    %p78 = scmp.ne.s32.totalorder %s66, %s67
    %p79 = scmp.eq.s32.totalorder %s15, 1
    %p80 = por %p78, %p79
    %p82 = scmp.ne.s32.totalorder %s67, %s81
    %p83 = scmp.eq.s32.totalorder %s15, 0
    %p84 = por %p82, %p83
    %s85 = ssub.s32 %s9, %s16
    %p86 = scmp.eq.s32.totalorder %s85, 0
    %s88 = sadd.s32 %s87, 1
    %s89 = scalar_select %p86, %s87, %s88
    %p92 = pneg %p86
    %p93 = scmp.eq.s32.totalorder %s9, 1
    %p94 = por %p92, %p93
    %p95 = scmp.ne.s32.totalorder %s87, %s90
    %p96 = scmp.eq.s32.totalorder %s9, 0
    %p97 = por %p95, %p96
    %p98 = scmp.ne.s32.totalorder %s87, %s90
    %p99 = scmp.eq.s32.totalorder %s14, 1
    %p100 = por %p98, %p99
    %p101 = scmp.ne.s32.totalorder %s90, %s91
    %p102 = scmp.eq.s32.totalorder %s14, 0
    %p103 = por %p101, %p102
    %p104 = scmp.ne.s32.totalorder %s90, %s91
    %p105 = scmp.eq.s32.totalorder %s15, 1
    %p106 = por %p104, %p105
    %p108 = scmp.ne.s32.totalorder %s91, %s107
    %p109 = scmp.eq.s32.totalorder %s15, 0
    %p110 = por %p108, %p109
    %p111 = scmp.le.s32.totalorder 1, %s9
    %p112 = scmp.lt.s32.totalorder %s9, 3
    %p113 = pnand %p111, %p112
    %p114 = pneg %p113
    // Predicated region
    $region9: #{se_block.1} parent=5 // pred_check
      _
    $region10: #{se_block.1} parent=5 // pred_check_branch
      %116 = sbr.rel (%p113) target = $region12
    $region11: #{se_block.1} parent=5 // pred_region
      %s117 = ssub.s32 %s9, 1
      // Predicated region
      $region13: #{se_block.1} parent=11 // pred_check
        %p118 = pneg %p56
      $region14: #{se_block.1} parent=11 // pred_check_branch
        %120 = sbr.rel (%p118) target = $region16
      $region15: #{se_block.1} parent=11 // pred_region
        _
      $region16: #{se_block.1} parent=11 // pred_fallthru
        _
      // Predicated region
      $region17: #{se_block.1} parent=11 // pred_check
        %p121 = pneg %p77
      $region18: #{se_block.1} parent=11 // pred_check_branch
        %123 = sbr.rel (%p121) target = $region20
      $region19: #{se_block.1} parent=11 // pred_region
        _
      $region20: #{se_block.1} parent=11 // pred_fallthru
        _
    $region12: #{se_block.1} parent=5 // pred_fallthru
      _
    %p124 = scmp.lt.s32.totalorder %s9, 2
    // Predicated region
    $region21: #{se_block.1} parent=5 // pred_check
      %p125 = pneg %p124
    $region22: #{se_block.1} parent=5 // pred_check_branch
      %127 = sbr.rel (%p125) target = $region24
    $region23: #{se_block.1} parent=5 // pred_region
      // Predicated region
      $region25: #{se_block.1} parent=23 // pred_check
        %p128 = pneg %p29
      $region26: #{se_block.1} parent=23 // pred_check_branch
        %130 = sbr.rel (%p128) target = $region28
      $region27: #{se_block.1} parent=23 // pred_region
        %p131 = scmp.lt.s32.totalorder %s9, 1
        %s132 = scalar_select %p131, %s9, 1
        %s133 = smul.addr %s132, 32
        %s134 = smul.addr %s133, 8
        %s135 = scalar_lea.vmem %s0, %s134
      $region28: #{se_block.1} parent=23 // pred_fallthru
        _
    $region24: #{se_block.1} parent=5 // pred_fallthru
      _
    %p136 = scmp.le.s32.totalorder 1, %s9
    %p137 = scmp.lt.s32.totalorder %s9, 3
    %p138 = pnand %p136, %p137
    %p139 = pneg %p138
    // Predicated region
    $region29: #{se_block.1} parent=5 // pred_check
      _
    $region30: #{se_block.1} parent=5 // pred_check_branch
      %141 = sbr.rel (%p138) target = $region32
    $region31: #{se_block.1} parent=5 // pred_region
      %s142 = ssub.s32 %s9, 1
      %p143 = scmp.lt.s32.totalorder %s14, 1
      %s144 = scalar_select %p143, %s14, 1
      %s145 = smul.addr %s144, 32
      %s146 = smul.addr %s145, 8
      %s147 = scalar_lea.vmem %s0, %s146
      %p148 = pneg %p35
      %p149 = pneg %p32
      %p150 = pneg %p56
      %p151 = pneg %p53
      %p152 = pneg %p77
      %p153 = pneg %p74
      %p154 = pneg %p103
      %p155 = pneg %p100
      %p156 = scmp.lt.s32.totalorder %s14, 1
      %s157 = scalar_select %p156, %s14, 1
      %s158 = smul.addr %s157, 32
      %s159 = smul.addr %s158, 8
      %s160 = scalar_lea.vmem %s3, %s159
      %p161 = scmp.lt.s32.totalorder %s14, 1
      %s162 = scalar_select %p161, %s14, 1
      %s163 = smul.addr %s162, 32
      %s164 = smul.addr %s163, 8
      %s165 = scalar_lea.vmem %s0, %s164
      %p166 = scmp.lt.s32.totalorder %s14, 1
      %s167 = scalar_select %p166, %s14, 1
      %s168 = smul.addr %s167, 32
      %s169 = smul.addr %s168, 8
      %s170 = scalar_lea.vmem %s3, %s169
      %v171 = vld [vmem:[%s165] sm:$0xff]
      %v172 = vld [vmem:[%s165 + $0x8] sm:$0xff]
      %v173 = vld [vmem:[%s165 + $0x10] sm:$0xff]
      %v174 = vld [vmem:[%s165 + $0x18] sm:$0xff]
      %v175 = vld [vmem:[%s165 + $0x20] sm:$0xff]
      %v176 = vld [vmem:[%s165 + $0x28] sm:$0xff]
      %v177 = vld [vmem:[%s165 + $0x30] sm:$0xff]
      %v178 = vld [vmem:[%s165 + $0x38] sm:$0xff]
      %v179 = vld [vmem:[%s165 + $0x40] sm:$0xff]
      %v180 = vld [vmem:[%s165 + $0x48] sm:$0xff]
      %v181 = vld [vmem:[%s165 + $0x50] sm:$0xff]
      %v182 = vld [vmem:[%s165 + $0x58] sm:$0xff]
      %v183 = vld [vmem:[%s165 + $0x60] sm:$0xff]
      %v184 = vld [vmem:[%s165 + $0x68] sm:$0xff]
      %v185 = vld [vmem:[%s165 + $0x70] sm:$0xff]
      %v186 = vld [vmem:[%s165 + $0x78] sm:$0xff]
      %v187 = vld [vmem:[%s165 + $0x80] sm:$0xff]
      %v188 = vld [vmem:[%s165 + $0x88] sm:$0xff]
      %v189 = vld [vmem:[%s165 + $0x90] sm:$0xff]
      %v190 = vld [vmem:[%s165 + $0x98] sm:$0xff]
      %v191 = vld [vmem:[%s165 + $0xa0] sm:$0xff]
      %v192 = vld [vmem:[%s165 + $0xa8] sm:$0xff]
      %v193 = vld [vmem:[%s165 + $0xb0] sm:$0xff]
      %v194 = vld [vmem:[%s165 + $0xb8] sm:$0xff]
      %v195 = vld [vmem:[%s165 + $0xc0] sm:$0xff]
      %v196 = vld [vmem:[%s165 + $0xc8] sm:$0xff]
      %v197 = vld [vmem:[%s165 + $0xd0] sm:$0xff]
      %v198 = vld [vmem:[%s165 + $0xd8] sm:$0xff]
      %v199 = vld [vmem:[%s165 + $0xe0] sm:$0xff]
      %v200 = vld [vmem:[%s165 + $0xe8] sm:$0xff]
      %v201 = vld [vmem:[%s165 + $0xf0] sm:$0xff]
      %v202 = vld [vmem:[%s165 + $0xf8] sm:$0xff]
      %v203 = vadd.f32 %v171, %v172
      %204 = vadd.xlane.f32.xlu0 %v203
      %v205 = vpop.xlane.xlu0 %204
      %v206 = vadd.f32 %v173, %v174
      %207 = vadd.xlane.f32.xlu0 %v206
      %v208 = vpop.xlane.xlu0 %207
      %v209 = vadd.f32 %v175, %v176
      %210 = vadd.xlane.f32.xlu0 %v209
      %v211 = vpop.xlane.xlu0 %210
      %v212 = vadd.f32 %v177, %v178
      %213 = vadd.xlane.f32.xlu0 %v212
      %v214 = vpop.xlane.xlu0 %213
      %v215 = vadd.f32 %v179, %v180
      %216 = vadd.xlane.f32.xlu0 %v215
      %v217 = vpop.xlane.xlu0 %216
      %v218 = vadd.f32 %v181, %v182
      %219 = vadd.xlane.f32.xlu0 %v218
      %v220 = vpop.xlane.xlu0 %219
      %v221 = vadd.f32 %v183, %v184
      %222 = vadd.xlane.f32.xlu0 %v221
      %v223 = vpop.xlane.xlu0 %222
      %v224 = vadd.f32 %v185, %v186
      %225 = vadd.xlane.f32.xlu0 %v224
      %v226 = vpop.xlane.xlu0 %225
      %v227 = vadd.f32 %v187, %v188
      %228 = vadd.xlane.f32.xlu0 %v227
      %v229 = vpop.xlane.xlu0 %228
      %v230 = vadd.f32 %v189, %v190
      %231 = vadd.xlane.f32.xlu0 %v230
      %v232 = vpop.xlane.xlu0 %231
      %v233 = vadd.f32 %v191, %v192
      %234 = vadd.xlane.f32.xlu0 %v233
      %v235 = vpop.xlane.xlu0 %234
      %v236 = vadd.f32 %v193, %v194
      %237 = vadd.xlane.f32.xlu0 %v236
      %v238 = vpop.xlane.xlu0 %237
      %v239 = vadd.f32 %v195, %v196
      %240 = vadd.xlane.f32.xlu0 %v239
      %v241 = vpop.xlane.xlu0 %240
      %v242 = vadd.f32 %v197, %v198
      %243 = vadd.xlane.f32.xlu0 %v242
      %v244 = vpop.xlane.xlu0 %243
      %v245 = vadd.f32 %v199, %v200
      %246 = vadd.xlane.f32.xlu0 %v245
      %v247 = vpop.xlane.xlu0 %246
      %v248 = vadd.f32 %v201, %v202
      %249 = vadd.xlane.f32.xlu0 %v248
      %v250 = vpop.xlane.xlu0 %249
      %v251 = vmul.f32 %v205, 0.00390625
      %v252 = vmul.f32 %v208, 0.00390625
      %v253 = vmul.f32 %v211, 0.00390625
      %v254 = vmul.f32 %v214, 0.00390625
      %v255 = vmul.f32 %v217, 0.00390625
      %v256 = vmul.f32 %v220, 0.00390625
      %v257 = vmul.f32 %v223, 0.00390625
      %v258 = vmul.f32 %v226, 0.00390625
      %v259 = vmul.f32 %v229, 0.00390625
      %v260 = vmul.f32 %v232, 0.00390625
      %v261 = vmul.f32 %v235, 0.00390625
      %v262 = vmul.f32 %v238, 0.00390625
      %v263 = vmul.f32 %v241, 0.00390625
      %v264 = vmul.f32 %v244, 0.00390625
      %v265 = vmul.f32 %v247, 0.00390625
      %v266 = vmul.f32 %v250, 0.00390625
      %v267 = vld [vmem:[%s1] sm:$0xff]
      %268 = vmatpush.msra.mxu0 %v266
      %269 = vmatpush.msra.mxu0 %v265
      %270 = vmatpush.msra.mxu0 %v264
      %271 = vmatpush.msra.mxu0 %v263
      %272 = vmatpush.msra.mxu0 %v262
      %273 = vmatpush.msra.mxu0 %v261
      %274 = vmatpush.msra.mxu0 %v260
      %275 = vmatpush.msra.mxu0 %v259
      %276 = vmatpush.msra.mxu0 %v258
      %277 = vmatpush.msra.mxu0 %v257
      %278 = vmatpush.msra.mxu0 %v256
      %279 = vmatpush.msra.mxu0 %v255
      %280 = vmatpush.msra.mxu0 %v254
      %281 = vmatpush.msra.mxu0 %v253
      %282 = vmatpush.msra.mxu0 %v252
      %283 = vmatpush.msra.mxu0 %v251
      %284 = vmatmul.f32.gmra.mxu0 %v267
      %v285 = vpop.f32.mrf.mxu0
      %v286 = vadd.f32 0.0, %v285
      %287 = vdwg.mxu0
      %v288 = vmax.f32 %v286, 0.0
      %v289 = vld [vmem:[%s2] sm:$0xff]
      %v290 = vld [vmem:[%s2 + $0x8] sm:$0xff]
      %v291 = vld [vmem:[%s2 + $0x10] sm:$0xff]
      %v292 = vld [vmem:[%s2 + $0x18] sm:$0xff]
      %v293 = vld [vmem:[%s2 + $0x20] sm:$0xff]
      %v294 = vld [vmem:[%s2 + $0x28] sm:$0xff]
      %v295 = vld [vmem:[%s2 + $0x30] sm:$0xff]
      %v296 = vld [vmem:[%s2 + $0x38] sm:$0xff]
      %v297 = vld [vmem:[%s2 + $0x40] sm:$0xff]
      %v298 = vld [vmem:[%s2 + $0x48] sm:$0xff]
      %v299 = vld [vmem:[%s2 + $0x50] sm:$0xff]
      %v300 = vld [vmem:[%s2 + $0x58] sm:$0xff]
      %v301 = vld [vmem:[%s2 + $0x60] sm:$0xff]
      %v302 = vld [vmem:[%s2 + $0x68] sm:$0xff]
      %v303 = vld [vmem:[%s2 + $0x70] sm:$0xff]
      %v304 = vld [vmem:[%s2 + $0x78] sm:$0xff]
      %vm305 = vcmask 64512
      %v307 = vsel %vm305, %v289, 0
      %v310 = vsel %vm305, %v290, 0
      %v313 = vsel %vm305, %v291, 0
      %v316 = vsel %vm305, %v292, 0
      %v319 = vsel %vm305, %v293, 0
      %v322 = vsel %vm305, %v294, 0
      %v325 = vsel %vm305, %v295, 0
      %v328 = vsel %vm305, %v296, 0
      %v331 = vsel %vm305, %v297, 0
      %v334 = vsel %vm305, %v298, 0
      %v337 = vsel %vm305, %v299, 0
      %v340 = vsel %vm305, %v300, 0
      %v343 = vsel %vm305, %v301, 0
      %v346 = vsel %vm305, %v302, 0
      %v349 = vsel %vm305, %v303, 0
      %v352 = vsel %vm305, %v304, 0
      %354 = vmatpush.msra.mxu0 0.0
      %355 = vmatpush.msra.mxu0 0.0
      %356 = vmatpush.msra.mxu0 0.0
      %357 = vmatpush.msra.mxu0 0.0
      %358 = vmatpush.msra.mxu0 0.0
      %359 = vmatpush.msra.mxu0 0.0
      %360 = vmatpush.msra.mxu0 0.0
      %361 = vmatpush.msra.mxu0 0.0
      %362 = vmatpush.msra.mxu0 0.0
      %363 = vmatpush.msra.mxu0 0.0
      %364 = vmatpush.msra.mxu0 0.0
      %365 = vmatpush.msra.mxu0 0.0
      %366 = vmatpush.msra.mxu0 0.0
      %367 = vmatpush.msra.mxu0 0.0
      %368 = vmatpush.msra.mxu0 0.0
      %369 = vmatpush.msra.mxu0 %v288
      %370 = vmatmul.f32.gmra.mxu0 %v307
      %v371 = vpop.f32.mrf.mxu0
      %v372 = vadd.f32 0.0, %v371
      %373 = vmatmul.f32.gmra.mxu0 %v310
      %v374 = vpop.f32.mrf.mxu0
      %v375 = vadd.f32 0.0, %v374
      %376 = vmatmul.f32.gmra.mxu0 %v313
      %v377 = vpop.f32.mrf.mxu0
      %v378 = vadd.f32 0.0, %v377
      %379 = vmatmul.f32.gmra.mxu0 %v316
      %v380 = vpop.f32.mrf.mxu0
      %v381 = vadd.f32 0.0, %v380
      %382 = vmatmul.f32.gmra.mxu0 %v319
      %v383 = vpop.f32.mrf.mxu0
      %v384 = vadd.f32 0.0, %v383
      %385 = vmatmul.f32.gmra.mxu0 %v322
      %v386 = vpop.f32.mrf.mxu0
      %v387 = vadd.f32 0.0, %v386
      %388 = vmatmul.f32.gmra.mxu0 %v325
      %v389 = vpop.f32.mrf.mxu0
      %v390 = vadd.f32 0.0, %v389
      %391 = vmatmul.f32.gmra.mxu0 %v328
      %v392 = vpop.f32.mrf.mxu0
      %v393 = vadd.f32 0.0, %v392
      %394 = vmatmul.f32.gmra.mxu0 %v331
      %v395 = vpop.f32.mrf.mxu0
      %v396 = vadd.f32 0.0, %v395
      %397 = vmatmul.f32.gmra.mxu0 %v334
      %v398 = vpop.f32.mrf.mxu0
      %v399 = vadd.f32 0.0, %v398
      %400 = vmatmul.f32.gmra.mxu0 %v337
      %v401 = vpop.f32.mrf.mxu0
      %v402 = vadd.f32 0.0, %v401
      %403 = vmatmul.f32.gmra.mxu0 %v340
      %v404 = vpop.f32.mrf.mxu0
      %v405 = vadd.f32 0.0, %v404
      %406 = vmatmul.f32.gmra.mxu0 %v343
      %v407 = vpop.f32.mrf.mxu0
      %v408 = vadd.f32 0.0, %v407
      %409 = vmatmul.f32.gmra.mxu0 %v346
      %v410 = vpop.f32.mrf.mxu0
      %v411 = vadd.f32 0.0, %v410
      %412 = vmatmul.f32.gmra.mxu0 %v349
      %v413 = vpop.f32.mrf.mxu0
      %v414 = vadd.f32 0.0, %v413
      %415 = vmatmul.f32.gmra.mxu0 %v352
      %v416 = vpop.f32.mrf.mxu0
      %v417 = vadd.f32 0.0, %v416
      %418 = vdwg.mxu0
      %v419 = vsub.f32 0.0, %v372
      %v420 = vsub.f32 0.0, %v375
      %v421 = vsub.f32 0.0, %v378
      %v422 = vsub.f32 0.0, %v381
      %v423 = vsub.f32 0.0, %v384
      %v424 = vsub.f32 0.0, %v387
      %v425 = vsub.f32 0.0, %v390
      %v426 = vsub.f32 0.0, %v393
      %v427 = vsub.f32 0.0, %v396
      %v428 = vsub.f32 0.0, %v399
      %v429 = vsub.f32 0.0, %v402
      %v430 = vsub.f32 0.0, %v405
      %v431 = vsub.f32 0.0, %v408
      %v432 = vsub.f32 0.0, %v411
      %v433 = vsub.f32 0.0, %v414
      %v434 = vsub.f32 0.0, %v417
      %v435 = vmul.f32 %v419, 1.442695
      %v436 = vpow.pop %v435
      %v437 = vmul.f32 %v420, 1.442695
      %v438 = vpow.pop %v437
      %v439 = vmul.f32 %v421, 1.442695
      %v440 = vpow.pop %v439
      %v441 = vmul.f32 %v422, 1.442695
      %v442 = vpow.pop %v441
      %v443 = vmul.f32 %v423, 1.442695
      %v444 = vpow.pop %v443
      %v445 = vmul.f32 %v424, 1.442695
      %v446 = vpow.pop %v445
      %v447 = vmul.f32 %v425, 1.442695
      %v448 = vpow.pop %v447
      %v449 = vmul.f32 %v426, 1.442695
      %v450 = vpow.pop %v449
      %v451 = vmul.f32 %v427, 1.442695
      %v452 = vpow.pop %v451
      %v453 = vmul.f32 %v428, 1.442695
      %v454 = vpow.pop %v453
      %v455 = vmul.f32 %v429, 1.442695
      %v456 = vpow.pop %v455
      %v457 = vmul.f32 %v430, 1.442695
      %v458 = vpow.pop %v457
      %v459 = vmul.f32 %v431, 1.442695
      %v460 = vpow.pop %v459
      %v461 = vmul.f32 %v432, 1.442695
      %v462 = vpow.pop %v461
      %v463 = vmul.f32 %v433, 1.442695
      %v464 = vpow.pop %v463
      %v465 = vmul.f32 %v434, 1.442695
      %v466 = vpow.pop %v465
      %v467 = vadd.f32 %v436, 1.0
      %v468 = vadd.f32 %v438, 1.0
      %v469 = vadd.f32 %v440, 1.0
      %v470 = vadd.f32 %v442, 1.0
      %v471 = vadd.f32 %v444, 1.0
      %v472 = vadd.f32 %v446, 1.0
      %v473 = vadd.f32 %v448, 1.0
      %v474 = vadd.f32 %v450, 1.0
      %v475 = vadd.f32 %v452, 1.0
      %v476 = vadd.f32 %v454, 1.0
      %v477 = vadd.f32 %v456, 1.0
      %v478 = vadd.f32 %v458, 1.0
      %v479 = vadd.f32 %v460, 1.0
      %v480 = vadd.f32 %v462, 1.0
      %v481 = vadd.f32 %v464, 1.0
      %v482 = vadd.f32 %v466, 1.0
      %v483 = vrcp.pop %v467
      %v484 = vmul.f32 %v467, %v483
      %v485 = vsub.f32 1.0, %v484
      %v486 = vmul.f32 %v483, %v485
      %v487 = vadd.f32 %v483, %v486
      %vm488 = vweird.f32 %v467
      %vm489 = vweird.f32 %v483
      %vm490 = vmor %vm488, %vm489
      %v491 = vsel %vm490, %v483, %v487
      %v492 = vand.u32 2147483647, %v467
      %vm493 = vcmp.eq.f32.partialorder %v492, 8.507059e+37
      %v494 = vand.u32 %v467, 2147483648
      %v495 = vor.u32 1.1754944e-38, %v494
      %v496 = vsel %vm493, %v495, %v491
      %v497 = vrcp.pop %v468
      %v498 = vmul.f32 %v468, %v497
      %v499 = vsub.f32 1.0, %v498
      %v500 = vmul.f32 %v497, %v499
      %v501 = vadd.f32 %v497, %v500
      %vm502 = vweird.f32 %v468
      %vm503 = vweird.f32 %v497
      %vm504 = vmor %vm502, %vm503
      %v505 = vsel %vm504, %v497, %v501
      %v506 = vand.u32 2147483647, %v468
      %vm507 = vcmp.eq.f32.partialorder %v506, 8.507059e+37
      %v508 = vand.u32 %v468, 2147483648
      %v509 = vor.u32 1.1754944e-38, %v508
      %v510 = vsel %vm507, %v509, %v505
      %v511 = vrcp.pop %v469
      %v512 = vmul.f32 %v469, %v511
      %v513 = vsub.f32 1.0, %v512
      %v514 = vmul.f32 %v511, %v513
      %v515 = vadd.f32 %v511, %v514
      %vm516 = vweird.f32 %v469
      %vm517 = vweird.f32 %v511
      %vm518 = vmor %vm516, %vm517
      %v519 = vsel %vm518, %v511, %v515
      %v520 = vand.u32 2147483647, %v469
      %vm521 = vcmp.eq.f32.partialorder %v520, 8.507059e+37
      %v522 = vand.u32 %v469, 2147483648
      %v523 = vor.u32 1.1754944e-38, %v522
      %v524 = vsel %vm521, %v523, %v519
      %v525 = vrcp.pop %v470
      %v526 = vmul.f32 %v470, %v525
      %v527 = vsub.f32 1.0, %v526
      %v528 = vmul.f32 %v525, %v527
      %v529 = vadd.f32 %v525, %v528
      %vm530 = vweird.f32 %v470
      %vm531 = vweird.f32 %v525
      %vm532 = vmor %vm530, %vm531
      %v533 = vsel %vm532, %v525, %v529
      %v534 = vand.u32 2147483647, %v470
      %vm535 = vcmp.eq.f32.partialorder %v534, 8.507059e+37
      %v536 = vand.u32 %v470, 2147483648
      %v537 = vor.u32 1.1754944e-38, %v536
      %v538 = vsel %vm535, %v537, %v533
      %v539 = vrcp.pop %v471
      %v540 = vmul.f32 %v471, %v539
      %v541 = vsub.f32 1.0, %v540
      %v542 = vmul.f32 %v539, %v541
      %v543 = vadd.f32 %v539, %v542
      %vm544 = vweird.f32 %v471
      %vm545 = vweird.f32 %v539
      %vm546 = vmor %vm544, %vm545
      %v547 = vsel %vm546, %v539, %v543
      %v548 = vand.u32 2147483647, %v471
      %vm549 = vcmp.eq.f32.partialorder %v548, 8.507059e+37
      %v550 = vand.u32 %v471, 2147483648
      %v551 = vor.u32 1.1754944e-38, %v550
      %v552 = vsel %vm549, %v551, %v547
      %v553 = vrcp.pop %v472
      %v554 = vmul.f32 %v472, %v553
      %v555 = vsub.f32 1.0, %v554
      %v556 = vmul.f32 %v553, %v555
      %v557 = vadd.f32 %v553, %v556
      %vm558 = vweird.f32 %v472
      %vm559 = vweird.f32 %v553
      %vm560 = vmor %vm558, %vm559
      %v561 = vsel %vm560, %v553, %v557
      %v562 = vand.u32 2147483647, %v472
      %vm563 = vcmp.eq.f32.partialorder %v562, 8.507059e+37
      %v564 = vand.u32 %v472, 2147483648
      %v565 = vor.u32 1.1754944e-38, %v564
      %v566 = vsel %vm563, %v565, %v561
      %v567 = vrcp.pop %v473
      %v568 = vmul.f32 %v473, %v567
      %v569 = vsub.f32 1.0, %v568
      %v570 = vmul.f32 %v567, %v569
      %v571 = vadd.f32 %v567, %v570
      %vm572 = vweird.f32 %v473
      %vm573 = vweird.f32 %v567
      %vm574 = vmor %vm572, %vm573
      %v575 = vsel %vm574, %v567, %v571
      %v576 = vand.u32 2147483647, %v473
      %vm577 = vcmp.eq.f32.partialorder %v576, 8.507059e+37
      %v578 = vand.u32 %v473, 2147483648
      %v579 = vor.u32 1.1754944e-38, %v578
      %v580 = vsel %vm577, %v579, %v575
      %v581 = vrcp.pop %v474
      %v582 = vmul.f32 %v474, %v581
      %v583 = vsub.f32 1.0, %v582
      %v584 = vmul.f32 %v581, %v583
      %v585 = vadd.f32 %v581, %v584
      %vm586 = vweird.f32 %v474
      %vm587 = vweird.f32 %v581
      %vm588 = vmor %vm586, %vm587
      %v589 = vsel %vm588, %v581, %v585
      %v590 = vand.u32 2147483647, %v474
      %vm591 = vcmp.eq.f32.partialorder %v590, 8.507059e+37
      %v592 = vand.u32 %v474, 2147483648
      %v593 = vor.u32 1.1754944e-38, %v592
      %v594 = vsel %vm591, %v593, %v589
      %v595 = vrcp.pop %v475
      %v596 = vmul.f32 %v475, %v595
      %v597 = vsub.f32 1.0, %v596
      %v598 = vmul.f32 %v595, %v597
      %v599 = vadd.f32 %v595, %v598
      %vm600 = vweird.f32 %v475
      %vm601 = vweird.f32 %v595
      %vm602 = vmor %vm600, %vm601
      %v603 = vsel %vm602, %v595, %v599
      %v604 = vand.u32 2147483647, %v475
      %vm605 = vcmp.eq.f32.partialorder %v604, 8.507059e+37
      %v606 = vand.u32 %v475, 2147483648
      %v607 = vor.u32 1.1754944e-38, %v606
      %v608 = vsel %vm605, %v607, %v603
      %v609 = vrcp.pop %v476
      %v610 = vmul.f32 %v476, %v609
      %v611 = vsub.f32 1.0, %v610
      %v612 = vmul.f32 %v609, %v611
      %v613 = vadd.f32 %v609, %v612
      %vm614 = vweird.f32 %v476
      %vm615 = vweird.f32 %v609
      %vm616 = vmor %vm614, %vm615
      %v617 = vsel %vm616, %v609, %v613
      %v618 = vand.u32 2147483647, %v476
      %vm619 = vcmp.eq.f32.partialorder %v618, 8.507059e+37
      %v620 = vand.u32 %v476, 2147483648
      %v621 = vor.u32 1.1754944e-38, %v620
      %v622 = vsel %vm619, %v621, %v617
      %v623 = vrcp.pop %v477
      %v624 = vmul.f32 %v477, %v623
      %v625 = vsub.f32 1.0, %v624
      %v626 = vmul.f32 %v623, %v625
      %v627 = vadd.f32 %v623, %v626
      %vm628 = vweird.f32 %v477
      %vm629 = vweird.f32 %v623
      %vm630 = vmor %vm628, %vm629
      %v631 = vsel %vm630, %v623, %v627
      %v632 = vand.u32 2147483647, %v477
      %vm633 = vcmp.eq.f32.partialorder %v632, 8.507059e+37
      %v634 = vand.u32 %v477, 2147483648
      %v635 = vor.u32 1.1754944e-38, %v634
      %v636 = vsel %vm633, %v635, %v631
      %v637 = vrcp.pop %v478
      %v638 = vmul.f32 %v478, %v637
      %v639 = vsub.f32 1.0, %v638
      %v640 = vmul.f32 %v637, %v639
      %v641 = vadd.f32 %v637, %v640
      %vm642 = vweird.f32 %v478
      %vm643 = vweird.f32 %v637
      %vm644 = vmor %vm642, %vm643
      %v645 = vsel %vm644, %v637, %v641
      %v646 = vand.u32 2147483647, %v478
      %vm647 = vcmp.eq.f32.partialorder %v646, 8.507059e+37
      %v648 = vand.u32 %v478, 2147483648
      %v649 = vor.u32 1.1754944e-38, %v648
      %v650 = vsel %vm647, %v649, %v645
      %v651 = vrcp.pop %v479
      %v652 = vmul.f32 %v479, %v651
      %v653 = vsub.f32 1.0, %v652
      %v654 = vmul.f32 %v651, %v653
      %v655 = vadd.f32 %v651, %v654
      %vm656 = vweird.f32 %v479
      %vm657 = vweird.f32 %v651
      %vm658 = vmor %vm656, %vm657
      %v659 = vsel %vm658, %v651, %v655
      %v660 = vand.u32 2147483647, %v479
      %vm661 = vcmp.eq.f32.partialorder %v660, 8.507059e+37
      %v662 = vand.u32 %v479, 2147483648
      %v663 = vor.u32 1.1754944e-38, %v662
      %v664 = vsel %vm661, %v663, %v659
      %v665 = vrcp.pop %v480
      %v666 = vmul.f32 %v480, %v665
      %v667 = vsub.f32 1.0, %v666
      %v668 = vmul.f32 %v665, %v667
      %v669 = vadd.f32 %v665, %v668
      %vm670 = vweird.f32 %v480
      %vm671 = vweird.f32 %v665
      %vm672 = vmor %vm670, %vm671
      %v673 = vsel %vm672, %v665, %v669
      %v674 = vand.u32 2147483647, %v480
      %vm675 = vcmp.eq.f32.partialorder %v674, 8.507059e+37
      %v676 = vand.u32 %v480, 2147483648
      %v677 = vor.u32 1.1754944e-38, %v676
      %v678 = vsel %vm675, %v677, %v673
      %v679 = vrcp.pop %v481
      %v680 = vmul.f32 %v481, %v679
      %v681 = vsub.f32 1.0, %v680
      %v682 = vmul.f32 %v679, %v681
      %v683 = vadd.f32 %v679, %v682
      %vm684 = vweird.f32 %v481
      %vm685 = vweird.f32 %v679
      %vm686 = vmor %vm684, %vm685
      %v687 = vsel %vm686, %v679, %v683
      %v688 = vand.u32 2147483647, %v481
      %vm689 = vcmp.eq.f32.partialorder %v688, 8.507059e+37
      %v690 = vand.u32 %v481, 2147483648
      %v691 = vor.u32 1.1754944e-38, %v690
      %v692 = vsel %vm689, %v691, %v687
      %v693 = vrcp.pop %v482
      %v694 = vmul.f32 %v482, %v693
      %v695 = vsub.f32 1.0, %v694
      %v696 = vmul.f32 %v693, %v695
      %v697 = vadd.f32 %v693, %v696
      %vm698 = vweird.f32 %v482
      %vm699 = vweird.f32 %v693
      %vm700 = vmor %vm698, %vm699
      %v701 = vsel %vm700, %v693, %v697
      %v702 = vand.u32 2147483647, %v482
      %vm703 = vcmp.eq.f32.partialorder %v702, 8.507059e+37
      %v704 = vand.u32 %v482, 2147483648
      %v705 = vor.u32 1.1754944e-38, %v704
      %v706 = vsel %vm703, %v705, %v701
      %708 = vset.pattern.permute.xlu0 0
      %709 = vperm.xlu0 %708, %v496
      %v710 = vpop.permute.xlu0 %709
      %713 = vset.pattern.permute.xlu0 0
      %714 = vperm.xlu0 %713, %v510
      %v715 = vpop.permute.xlu0 %714
      %718 = vset.pattern.permute.xlu0 0
      %719 = vperm.xlu0 %718, %v524
      %v720 = vpop.permute.xlu0 %719
      %723 = vset.pattern.permute.xlu0 0
      %724 = vperm.xlu0 %723, %v538
      %v725 = vpop.permute.xlu0 %724
      %728 = vset.pattern.permute.xlu0 0
      %729 = vperm.xlu0 %728, %v552
      %v730 = vpop.permute.xlu0 %729
      %733 = vset.pattern.permute.xlu0 0
      %734 = vperm.xlu0 %733, %v566
      %v735 = vpop.permute.xlu0 %734
      %738 = vset.pattern.permute.xlu0 0
      %739 = vperm.xlu0 %738, %v580
      %v740 = vpop.permute.xlu0 %739
      %743 = vset.pattern.permute.xlu0 0
      %744 = vperm.xlu0 %743, %v594
      %v745 = vpop.permute.xlu0 %744
      %748 = vset.pattern.permute.xlu0 0
      %749 = vperm.xlu0 %748, %v608
      %v750 = vpop.permute.xlu0 %749
      %753 = vset.pattern.permute.xlu0 0
      %754 = vperm.xlu0 %753, %v622
      %v755 = vpop.permute.xlu0 %754
      %758 = vset.pattern.permute.xlu0 0
      %759 = vperm.xlu0 %758, %v636
      %v760 = vpop.permute.xlu0 %759
      %763 = vset.pattern.permute.xlu0 0
      %764 = vperm.xlu0 %763, %v650
      %v765 = vpop.permute.xlu0 %764
      %768 = vset.pattern.permute.xlu0 0
      %769 = vperm.xlu0 %768, %v664
      %v770 = vpop.permute.xlu0 %769
      %773 = vset.pattern.permute.xlu0 0
      %774 = vperm.xlu0 %773, %v678
      %v775 = vpop.permute.xlu0 %774
      %778 = vset.pattern.permute.xlu0 0
      %779 = vperm.xlu0 %778, %v692
      %v780 = vpop.permute.xlu0 %779
      %783 = vset.pattern.permute.xlu0 0
      %784 = vperm.xlu0 %783, %v706
      %v785 = vpop.permute.xlu0 %784
      %v787 = vmul.f32 %v171, %v710
      %v788 = vmul.f32 %v172, %v710
      %v789 = vmul.f32 %v173, %v715
      %v790 = vmul.f32 %v174, %v715
      %v791 = vmul.f32 %v175, %v720
      %v792 = vmul.f32 %v176, %v720
      %v793 = vmul.f32 %v177, %v725
      %v794 = vmul.f32 %v178, %v725
      %v795 = vmul.f32 %v179, %v730
      %v796 = vmul.f32 %v180, %v730
      %v797 = vmul.f32 %v181, %v735
      %v798 = vmul.f32 %v182, %v735
      %v799 = vmul.f32 %v183, %v740
      %v800 = vmul.f32 %v184, %v740
      %v801 = vmul.f32 %v185, %v745
      %v802 = vmul.f32 %v186, %v745
      %v803 = vmul.f32 %v187, %v750
      %v804 = vmul.f32 %v188, %v750
      %v805 = vmul.f32 %v189, %v755
      %v806 = vmul.f32 %v190, %v755
      %v807 = vmul.f32 %v191, %v760
      %v808 = vmul.f32 %v192, %v760
      %v809 = vmul.f32 %v193, %v765
      %v810 = vmul.f32 %v194, %v765
      %v811 = vmul.f32 %v195, %v770
      %v812 = vmul.f32 %v196, %v770
      %v813 = vmul.f32 %v197, %v775
      %v814 = vmul.f32 %v198, %v775
      %v815 = vmul.f32 %v199, %v780
      %v816 = vmul.f32 %v200, %v780
      %v817 = vmul.f32 %v201, %v785
      %v818 = vmul.f32 %v202, %v785
      %819 = vst [vmem:[%s170] sm:$0xff] %v787
      %820 = vst [vmem:[%s170 + $0x8] sm:$0xff] %v788
      %821 = vst [vmem:[%s170 + $0x10] sm:$0xff] %v789
      %822 = vst [vmem:[%s170 + $0x18] sm:$0xff] %v790
      %823 = vst [vmem:[%s170 + $0x20] sm:$0xff] %v791
      %824 = vst [vmem:[%s170 + $0x28] sm:$0xff] %v792
      %825 = vst [vmem:[%s170 + $0x30] sm:$0xff] %v793
      %826 = vst [vmem:[%s170 + $0x38] sm:$0xff] %v794
      %827 = vst [vmem:[%s170 + $0x40] sm:$0xff] %v795
      %828 = vst [vmem:[%s170 + $0x48] sm:$0xff] %v796
      %829 = vst [vmem:[%s170 + $0x50] sm:$0xff] %v797
      %830 = vst [vmem:[%s170 + $0x58] sm:$0xff] %v798
      %831 = vst [vmem:[%s170 + $0x60] sm:$0xff] %v799
      %832 = vst [vmem:[%s170 + $0x68] sm:$0xff] %v800
      %833 = vst [vmem:[%s170 + $0x70] sm:$0xff] %v801
      %834 = vst [vmem:[%s170 + $0x78] sm:$0xff] %v802
      %835 = vst [vmem:[%s170 + $0x80] sm:$0xff] %v803
      %836 = vst [vmem:[%s170 + $0x88] sm:$0xff] %v804
      %837 = vst [vmem:[%s170 + $0x90] sm:$0xff] %v805
      %838 = vst [vmem:[%s170 + $0x98] sm:$0xff] %v806
      %839 = vst [vmem:[%s170 + $0xa0] sm:$0xff] %v807
      %840 = vst [vmem:[%s170 + $0xa8] sm:$0xff] %v808
      %841 = vst [vmem:[%s170 + $0xb0] sm:$0xff] %v809
      %842 = vst [vmem:[%s170 + $0xb8] sm:$0xff] %v810
      %843 = vst [vmem:[%s170 + $0xc0] sm:$0xff] %v811
      %844 = vst [vmem:[%s170 + $0xc8] sm:$0xff] %v812
      %845 = vst [vmem:[%s170 + $0xd0] sm:$0xff] %v813
      %846 = vst [vmem:[%s170 + $0xd8] sm:$0xff] %v814
      %847 = vst [vmem:[%s170 + $0xe0] sm:$0xff] %v815
      %848 = vst [vmem:[%s170 + $0xe8] sm:$0xff] %v816
      %849 = vst [vmem:[%s170 + $0xf0] sm:$0xff] %v817
      %850 = vst [vmem:[%s170 + $0xf8] sm:$0xff] %v818
      %p851 = scmp.lt.s32.totalorder %s14, 1
      %s852 = scalar_select %p851, %s14, 1
      %s853 = smul.addr %s852, 32
      %s854 = smul.addr %s853, 8
      %s855 = scalar_lea.vmem %s3, %s854
      // Predicated region
      $region33: #{se_block.1} parent=31 // pred_check
        %p856 = pneg %p100
      $region34: #{se_block.1} parent=31 // pred_check_branch
        %858 = sbr.rel (%p856) target = $region36
      $region35: #{se_block.1} parent=31 // pred_region
        _
      $region36: #{se_block.1} parent=31 // pred_fallthru
        _
    $region32: #{se_block.1} parent=5 // pred_fallthru
      _
    %p859 = scmp.le.s32.totalorder 2, %s9
    // Predicated region
    $region37: #{se_block.1} parent=5 // pred_check
      %p860 = pneg %p859
    $region38: #{se_block.1} parent=5 // pred_check_branch
      %862 = sbr.rel (%p860) target = $region40
    $region39: #{se_block.1} parent=5 // pred_region
      %s863 = ssub.s32 %s9, 2
      // Predicated region
      $region41: #{se_block.1} parent=39 // pred_check
        %p864 = pneg %p106
      $region42: #{se_block.1} parent=39 // pred_check_branch
        %866 = sbr.rel (%p864) target = $region44
      $region43: #{se_block.1} parent=39 // pred_region
        %p867 = scmp.lt.s32.totalorder %s15, 1
        %s868 = scalar_select %p867, %s15, 1
        %s869 = smul.addr %s868, 32
        %s870 = smul.addr %s869, 8
        %s871 = scalar_lea.vmem %s3, %s870
      $region44: #{se_block.1} parent=39 // pred_fallthru
        _
    $region40: #{se_block.1} parent=5 // pred_fallthru
      _
  $region6: #{se_block.1} parent=0 // loop_footer
    %s13 = sadd.s32 1, %s9
  $region7: #{se_block.1} parent=0 // loop_footer_branch
    %8 = sbr.rel target = $region3
  $region8: #{se_block.1} parent=0 // loop_exit
    _

</llo_original>
